<compile_context>
chip_gen: v7x
topology: tpu7x:2x2x1
jax: 0.10.0
libtpu: 0.0.40
codegen_flags: <defaults>
</compile_context>

<pallas_src>
import jax
import jax.numpy as jnp
from jax.experimental import pallas as pl
from jax.experimental.pallas import tpu as pltpu

_LANE = 128
_SUBLANE = 8


def _round_up(x, m):
    return ((x + m - 1) // m) * m


def _round_down(x, m):
    return (x // m) * m


def _linear_rows_kernel(x_ref, w_ref, b_ref, o_ref):
    # x_ref: (TB, F) VMEM tile streamed over the batch; w_ref: (1, F) VMEM
    # (grid-resident); b_ref: (1, 1) SMEM scalar; o_ref: (1, TB) lane-dense row.
    x = x_ref[...].astype(jnp.float32)
    w = w_ref[...].astype(jnp.float32)                 # broadcasts over rows
    acc = jnp.sum(x * w, axis=-1, keepdims=True)       # (TB, 1) f32 on VPU/XLU
    o_ref[...] = (acc + b_ref[0, 0]).reshape(o_ref.shape).astype(o_ref.dtype)


def _make_linear_ftiled_kernel(F, TF):
    # F-tiled path: grid=(nb, nf), output resident across the (last, "arbitrary")
    # F axis; partial row sums accumulate in a VMEM (TB, 1) f32 scratch.
    def kernel(x_ref, w_ref, b_ref, o_ref, acc_ref):
        k = pl.program_id(1)
        x = x_ref[...].astype(jnp.float32)
        w = w_ref[...].astype(jnp.float32)
        # Mask the ragged final feature block (OOB columns are garbage).
        col = k * TF + jax.lax.broadcasted_iota(jnp.int32, x.shape, 1)
        prod = jnp.where(col < F, x * w, 0.0)
        partial = jnp.sum(prod, axis=-1, keepdims=True)  # (TB, 1)

        @pl.when(k == 0)
        def _():
            acc_ref[...] = partial

        @pl.when(k > 0)
        def _():
            acc_ref[...] = acc_ref[...] + partial

        @pl.when(k == pl.num_programs(1) - 1)
        def _():
            o_ref[...] = (acc_ref[...] + b_ref[0, 0]).reshape(o_ref.shape).astype(o_ref.dtype)

    return kernel


def _plan_tiles(B, F, per_buffer_budget_bytes, itemsize, target_steps=8):
    """Pick (mode, TB, TF) from the padded VMEM footprint, not nominal bytes."""
    f_pad = _round_up(F, _LANE)
    bytes_per_full_row = f_pad * itemsize
    b8 = _round_up(B, _SUBLANE)

    # Narrow-feature path: a full-F row tile of min(128, b8) rows fits a buffer.
    min_rows = min(_LANE, b8)
    if bytes_per_full_row * min_rows <= per_buffer_budget_bytes:
        if B <= 1024 and bytes_per_full_row * b8 <= per_buffer_budget_bytes:
            # Whole batch in one tile; block == full dims, no raggedness at all.
            return "rows", B, F
        rows_by_budget = max(_LANE, _round_down(per_buffer_budget_bytes // bytes_per_full_row, _LANE))
        # Keep ~target_steps grid steps so v7x's 2 TCs both get work, without
        # shrinking tiles below the point where per-step overhead matters.
        rows_for_steps = max(_LANE, _round_up(pl.cdiv(B, target_steps), _LANE))
        return "rows", min(rows_by_budget, rows_for_steps), F

    # Wide-feature path: tile the feature axis too.
    if B <= _LANE:
        TB = B
    else:
        TB = min(512, max(_LANE, _round_up(pl.cdiv(B, target_steps), _LANE)))
    tb8 = _round_up(TB, _SUBLANE)
    TF = max(_LANE, _round_down(per_buffer_budget_bytes // (tb8 * itemsize), _LANE))
    TF = min(TF, f_pad)
    return "ftiled", TB, TF


def linear_regression_forward(x, weight, bias, *, per_buffer_budget_bytes=8 * 1024 * 1024):
    """x: (B, F); weight: (1, F) (torch (out, in) layout); bias: (1,).

    Returns (B, 1), matching nn.LazyLinear(1).
    """
    B, F = x.shape
    assert weight.shape == (1, F)
    itemsize = jnp.dtype(x.dtype).itemsize

    mode, TB, TF = _plan_tiles(B, F, per_buffer_budget_bytes, itemsize)
    nb = pl.cdiv(B, TB)
    out_cols = nb * TB
    b_smem = bias.reshape(1, 1).astype(jnp.float32)

    cost = pl.CostEstimate(
        flops=2 * B * F,
        transcendentals=0,
        bytes_accessed=B * F * itemsize + out_cols * itemsize + F * itemsize + 4,
    )

    if mode == "rows":
        out = pl.pallas_call(
            _linear_rows_kernel,
            out_shape=jax.ShapeDtypeStruct((1, out_cols), x.dtype),
            grid=(nb,),
            in_specs=[
                pl.BlockSpec((TB, F), lambda i: (i, 0)),              # streamed X tiles
                pl.BlockSpec((1, F), lambda i: (0, 0)),               # resident weight
                pl.BlockSpec(memory_space=pltpu.MemorySpace.SMEM),    # scalar bias
            ],
            out_specs=pl.BlockSpec((1, TB), lambda i: (0, i)),        # lane-dense rows
            compiler_params=pltpu.CompilerParams(
                dimension_semantics=("parallel",),
                vmem_limit_bytes=32 * 1024 * 1024,
            ),
            cost_estimate=cost,
        )(x, weight, b_smem)
    else:
        nf = pl.cdiv(F, TF)
        out = pl.pallas_call(
            _make_linear_ftiled_kernel(F, TF),
            out_shape=jax.ShapeDtypeStruct((1, out_cols), x.dtype),
            grid=(nb, nf),
            in_specs=[
                pl.BlockSpec((TB, TF), lambda i, k: (i, k)),
                pl.BlockSpec((1, TF), lambda i, k: (0, k)),
                pl.BlockSpec(memory_space=pltpu.MemorySpace.SMEM),
            ],
            out_specs=pl.BlockSpec((1, TB), lambda i, k: (0, i)),
            scratch_shapes=[pltpu.VMEM((TB, 1), jnp.float32)],
            compiler_params=pltpu.CompilerParams(
                dimension_semantics=("parallel", "arbitrary"),
                vmem_limit_bytes=32 * 1024 * 1024,
            ),
            cost_estimate=cost,
        )(x, weight, b_smem)

    return out[0, :B].reshape(B, 1)


if __name__ == "__main__":
    key = jax.random.PRNGKey(0)
    k_x, k_w, k_x2, k_w2, k_x3, k_w3 = jax.random.split(key, 6)

    # Primary check: small shapes mirroring the module (LazyLinear(1) on (B, F)).
    batch, features = 8, 32
    x = jax.random.normal(k_x, (batch, features), dtype=jnp.float32)
    # Deterministic parameter init mirroring the module's __init__:
    #   self.net.weight.data.normal_(0, 0.01); self.net.bias.data.fill_(0)
    weight = 0.01 * jax.random.normal(k_w, (1, features), dtype=jnp.float32)
    bias = jnp.zeros((1,), dtype=jnp.float32)

    y = jax.block_until_ready(linear_regression_forward(x, weight, bias))
    y_ref = x @ weight.T + bias
    assert y.shape == (batch, 1)
    assert jnp.allclose(y, y_ref, atol=1e-5, rtol=1e-5)

    # Extra check: ragged multi-tile batch path (TB multiple of 128, lane-dense out).
    b2, f2 = 1500, 32
    x2 = jax.random.normal(k_x2, (b2, f2), dtype=jnp.float32)
    w2 = 0.01 * jax.random.normal(k_w2, (1, f2), dtype=jnp.float32)
    bias2 = jnp.full((1,), 0.25, dtype=jnp.float32)
    y2 = jax.block_until_ready(linear_regression_forward(x2, w2, bias2))
    assert jnp.allclose(y2, x2 @ w2.T + bias2, atol=1e-4, rtol=1e-4)

    # Extra check: F-tiled accumulator path with a ragged feature block
    # (forced via a tiny per-buffer budget).
    b3, f3 = 50, 200
    x3 = jax.random.normal(k_x3, (b3, f3), dtype=jnp.float32)
    w3 = 0.01 * jax.random.normal(k_w3, (1, f3), dtype=jnp.float32)
    bias3 = jnp.full((1,), -0.5, dtype=jnp.float32)
    y3 = jax.block_until_ready(
        linear_regression_forward(x3, w3, bias3, per_buffer_budget_bytes=16 * 1024))
    assert jnp.allclose(y3, x3 @ w3.T + bias3, atol=1e-4, rtol=1e-4)

    # TODO(synk): loss (MSELoss), SGD configure_optimizers and ProgressBoard
    # plotting are training-time utilities, not part of the forward pass.
    print("KERNEL_OK")
</pallas_src>

<mosaic_0001>
module attributes {stable_mosaic.version = 11 : i64} {
  func.func @_linear_rows_kernel(%arg0: i32, %arg1: memref<8x32xf32, #tpu.memory_space<vmem>>, %arg2: memref<1x32xf32, #tpu.memory_space<vmem>>, %arg3: memref<1x1xf32, #tpu.memory_space<smem>>, %arg4: memref<1x8xf32, #tpu.memory_space<vmem>>) attributes {dimension_semantics = [#tpu.dimension_semantics<parallel>], iteration_bounds = array<i64: 1>, scalar_prefetch = 0 : i64, scratch_operands = 0 : i64, tpu.core_type = #tpu.core_type<tc>, window_params = [{transform_indices = @transform_0, window_bounds = array<i64: 8, 32>}, {pipeline_mode = #tpu.pipeline_mode<synchronous>, transform_indices = @transform_1, window_bounds = array<i64: 1, 32>}, {transform_indices = @transform_2, window_bounds = array<i64: 1, 1>}, {transform_indices = @transform_3, window_bounds = array<i64: 1, 8>}]} {
    %c0 = arith.constant 0 : index
    %c0_0 = arith.constant 0 : index
    %0 = vector.load %arg1[%c0, %c0_0] : memref<8x32xf32, #tpu.memory_space<vmem>>, vector<8x32xf32>
    %c0_1 = arith.constant 0 : index
    %c0_2 = arith.constant 0 : index
    %1 = vector.load %arg2[%c0_1, %c0_2] : memref<1x32xf32, #tpu.memory_space<vmem>>, vector<1x32xf32>
    %2 = vector.broadcast %1 : vector<1x32xf32> to vector<8x32xf32>
    %3 = arith.mulf %0, %2 : vector<8x32xf32>
    %cst = arith.constant dense<0.000000e+00> : vector<8xf32>
    %4 = vector.multi_reduction <add>, %3, %cst [1] : vector<8x32xf32> to vector<8xf32>
    %5 = vector.shape_cast %4 : vector<8xf32> to vector<8x1xf32>
    %c0_3 = arith.constant 0 : index
    %c0_4 = arith.constant 0 : index
    %6 = memref.load %arg3[%c0_3, %c0_4] : memref<1x1xf32, #tpu.memory_space<smem>>
    %7 = vector.broadcast %6 : f32 to vector<8x1xf32>
    %8 = arith.addf %5, %7 : vector<8x1xf32>
    %9 = vector.shape_cast %8 : vector<8x1xf32> to vector<1x8xf32>
    %c0_5 = arith.constant 0 : index
    %c0_6 = arith.constant 0 : index
    %10 = vector.load %arg4[%c0_5, %c0_6] : memref<1x8xf32, #tpu.memory_space<vmem>>, vector<1x8xf32>
    tpu.vector_store %arg4[%c0_5, %c0_6], %9 {strides = array<i32>} : memref<1x8xf32, #tpu.memory_space<vmem>>, vector<1x8xf32>,
    return
  }
  func.func @transform_0(%arg0: i32) -> (i32, i32) {
    %c0_i32 = arith.constant 0 : i32
    %c0_i32_0 = arith.constant 0 : i32
    return %arg0, %c0_i32 : i32, i32
  }
  func.func @transform_1(%arg0: i32) -> (i32, i32) {
    %c0_i32 = arith.constant 0 : i32
    %c0_i32_0 = arith.constant 0 : i32
    %c0_i32_1 = arith.constant 0 : i32
    return %c0_i32, %c0_i32_0 : i32, i32
  }
  func.func @transform_2(%arg0: i32) -> (i32, i32) {
    %c0_i32 = arith.constant 0 : i32
    %c0_i32_0 = arith.constant 0 : i32
    %c0_i32_1 = arith.constant 0 : i32
    return %c0_i32, %c0_i32_0 : i32, i32
  }
  func.func @transform_3(%arg0: i32) -> (i32, i32) {
    %c0_i32 = arith.constant 0 : i32
    %c0_i32_0 = arith.constant 0 : i32
    return %c0_i32, %arg0 : i32, i32
  }
}

</mosaic_0001>

<llo_original>
// kernel: tpu_custom_call.1
$region0: #{tpu_custom_call.1}
  #allocation0 [shape = 'u32[]', space=smem, size = 0x4, offset = 0x4, fixed_abs, tag = 'smem constant byte address 0x4 - core index']
  #allocation1 [shape = 'u32[144,128]{1,0:T(1,128)}', space=vmem, size = 0x12000, scoped, tag = 'internal scratch']
  #allocation2 [shape = 'f32[1,1]{1,0:T(1,128)S(6)}', space=smem, size = 0x200, scoped, tag = 'scoped memory for tpu_custom_call.1']
  %s0 = inlined_call_operand.hbm [shape: f32[8,32], index: 0, kind: input, shape index: {}]
  %s1 = inlined_call_operand.vmem [shape: f32[1,32], index: 1, kind: input, shape index: {}]
  %s2 = inlined_call_operand.<no memory space> [shape: f32[1,1], index: 2, kind: input, shape index: {}]
  %s3 = inlined_call_operand.hbm [shape: f32[1,8], index: 3, kind: output, shape index: {}]
  %s4 = sld [smem:[#allocation0]]
  $region26: #{tpu_custom_call.1} parent=0
    _
  %s6 = ssub.s32 1, %s4
  %s7 = scalar_select 0, %s6, %s4
  %8 = sst [smem:[#allocation2]] %s2
  $region1: #{tpu_custom_call.1} parent=0
    #allocation3 [shape = 'u8[4096]{0}', space=vmem, size = 0x1000, scoped, tag = 'input window, operand 0, single buffered']
    #allocation4 [shape = 's32[1]{0}', space=sflag, size = 0x4, scoped, tag = 'scoped memory for tpu_custom_call.1']
    #allocation5 [shape = 's32[1]{0}', space=sflag, size = 0x4, scoped, tag = 'scoped memory for tpu_custom_call.1']
    #allocation6 [shape = 'u8[512]{0}', space=vmem, size = 0x400, scoped, tag = 'output window, operand 0, single buffered']
    %9 = vsyncpa [#allocation4], 0
    %10 = vsyncpa [#allocation5], 0
    // Predicated region
    $region2: #{tpu_custom_call.1} parent=1 // pred_check
      _
    $region3: #{tpu_custom_call.1} parent=1 // pred_check_branch
      %12 = sbr.rel (0) target = $region5
    $region4: #{tpu_custom_call.1} parent=1 // pred_region
      %s14 = ssub.s32 128, 128
      %15 = vsyncadd [#allocation4], %s14
      %s17 = sshll.u32 [#allocation3], 4
      %s18 = int_to_ptr.vmem [resolvable:$true] %s17
      %20 = dma.hbm_to_vmem [thread:$0]  %s0, 128, %s18, [#allocation4]
    $region5: #{tpu_custom_call.1} parent=1 // pred_fallthru
      _
    // Predicated region
    $region6: #{tpu_custom_call.1} parent=1 // pred_check
      _
    $region7: #{tpu_custom_call.1} parent=1 // pred_check_branch
      %22 = sbr.rel (0) target = $region9
    $region8: #{tpu_custom_call.1} parent=1 // pred_region
      _
    $region9: #{tpu_custom_call.1} parent=1 // pred_fallthru
      _
    // Predicated region
    $region10: #{tpu_custom_call.1} parent=1 // pred_check
      _
    $region11: #{tpu_custom_call.1} parent=1 // pred_check_branch
      %24 = sbr.rel (0) target = $region13
    $region12: #{tpu_custom_call.1} parent=1 // pred_region
      _
    $region13: #{tpu_custom_call.1} parent=1 // pred_fallthru
      _
    // Predicated region
    $region14: #{tpu_custom_call.1} parent=1 // pred_check
      _
    $region15: #{tpu_custom_call.1} parent=1 // pred_check_branch
      %26 = sbr.rel (0) target = $region17
    $region16: #{tpu_custom_call.1} parent=1 // pred_region
      %27 = dma.done [#allocation4], 128
    $region17: #{tpu_custom_call.1} parent=1 // pred_fallthru
      _
    %v28 = vld [vmem:[#allocation3] sm:$0xff]
    %v29 = vld [vmem:[%s1] sm:$0x1]
    %v31 = vlaneseq
    %v32 = vshrl.u32 %v31, 7
    %v33 = vsub.s32 0, %v32
    %v34 = vrot.slane %v29, %v33
    %v36 = vmul.f32 %v28, %v34
    %vm37 = vcmask 261120
    %v38 = vsel %vm37, %v36, 0.0
    %39 = vadd.xlane.f32.xlu0 %v38
    %v40 = vpop.xlane.xlu0 %39
    %s41 = sld [smem:[#allocation2]]
    %v42 = vstv %s41
    %v43 = vadd.f32 %v40, %v42
    %v45 = vlaneseq
    %v46 = vand.u32 %v45, 127
    %v47 = vlaneseq
    %v48 = vshrl.u32 %v47, 7
    %v49 = vsub.s32 %v46, %v48
    %v50 = vrot.slane %v43, %v49
    %vm52 = vcmask 57344
    %53 = vst.msk [vmem:[#allocation6] sm:$0x1] %vm52, %v50
    // Predicated region
    $region18: #{tpu_custom_call.1} parent=1 // pred_check
      _
    $region19: #{tpu_custom_call.1} parent=1 // pred_check_branch
      %55 = sbr.rel (0) target = $region21
    $region20: #{tpu_custom_call.1} parent=1 // pred_region
      %s57 = ssub.s32 16, 16
      %58 = vsyncadd [#allocation5], %s57
      %s60 = sshll.u32 [#allocation6], 4
      %s61 = int_to_ptr.vmem [resolvable:$true] %s60
      %63 = dma.vmem_to_hbm [thread:$0]  %s61, 16, %s3, [#allocation5]
    $region21: #{tpu_custom_call.1} parent=1 // pred_fallthru
      _
    // Predicated region
    $region22: #{tpu_custom_call.1} parent=1 // pred_check
      _
    $region23: #{tpu_custom_call.1} parent=1 // pred_check_branch
      %65 = sbr.rel (0) target = $region25
    $region24: #{tpu_custom_call.1} parent=1 // pred_region
      %66 = dma.done [#allocation5], 16
    $region25: #{tpu_custom_call.1} parent=1 // pred_fallthru
      _
    %67 = vsyncpa [#allocation4], 1
    %68 = vsyncpa [#allocation5], 1

</llo_original>
